<compile_context>
chip_gen: v6e
topology: v6e:2x2x1
jax: 0.10.0
libtpu: 0.0.40
codegen_flags: <defaults>
</compile_context>

<pallas_src>
import functools

import jax
import jax.numpy as jnp
from jax.experimental import pallas as pl
from jax.experimental.pallas import tpu as pltpu

_LANES = 128


def _round_up(x, m):
    return (x + m - 1) // m * m


def _sublane_align(dtype):
    # minimum second-to-last tile dim: 8 (4-byte), 16 (2-byte), 32 (1-byte) dtypes
    return max(8, 32 // jnp.dtype(dtype).itemsize)


def _tpu_config():
    """Return (num_partials, scoped_vmem_limit_bytes), generation aware."""
    try:
        vmem_cap = int(pltpu.get_tpu_info().vmem_capacity_bytes)
    except Exception:
        vmem_cap = None
    if vmem_cap is None:
        return 2, 32 << 20                            # safe on every generation
    if vmem_cap >= (128 << 20):
        return 1, 64 << 20                            # v5e / v6e: 1 TC, 128 MiB VMEM
    return 2, min(32 << 20, max(16 << 20, vmem_cap // 2))   # v7x: 2 TCs, 64 MiB VMEM


def _masked_ce_kernel(logits_ref, target_ref, acc_ref, *, ignore_index):
    i = pl.program_id(1)   # reduction axis (token tiles)

    @pl.when(i == 0)
    def _():
        acc_ref[...] = jnp.zeros_like(acc_ref)

    logits = logits_ref[...].astype(jnp.float32)        # (tn, C), upcast on VPU
    tgt = target_ref[...]                               # (tn, 1) int32
    valid = tgt != ignore_index                         # (tn, 1) bool

    # numerically-stable log-sum-exp on the shifted logits; the `+ m` term cancels
    # against the shifted picked logit, so it is never materialized.
    m = jnp.max(logits, axis=-1, keepdims=True)
    shifted = logits - m
    lse = jnp.log(jnp.sum(jnp.exp(shifted), axis=-1, keepdims=True))       # (tn, 1)

    # gather shifted[target] via select+sum (no one-hot cast / full-tile multiply)
    cls = jax.lax.broadcasted_iota(jnp.int32, shifted.shape, 1)
    picked = jnp.sum(jnp.where(cls == tgt, shifted, 0.0), axis=-1, keepdims=True)

    loss = lse - picked                                  # (tn, 1)

    tile_sum = jnp.sum(jnp.where(valid, loss, 0.0))      # where, not *mask: no NaN leak
    tile_cnt = jnp.sum(valid.astype(jnp.float32))

    lane = jax.lax.broadcasted_iota(jnp.int32, acc_ref.shape, 2)   # (1, 1, 2)
    acc_ref[...] = acc_ref[...] + jnp.where(lane == 0, tile_sum, tile_cnt)


def _masked_bce_kernel(logits_ref, target_ref, acc_ref, *, ignore_index):
    i = pl.program_id(1)

    @pl.when(i == 0)
    def _():
        acc_ref[...] = jnp.zeros_like(acc_ref)

    x = logits_ref[...].astype(jnp.float32)              # (tr, 128) lane-dense
    t = target_ref[...]                                  # (tr, 128) int8/int32
    valid = t != ignore_index
    z = jnp.where(valid, t, 0).astype(jnp.float32)       # keep ignored rows finite

    # binary_cross_entropy_with_logits, reduction='none' (stable form)
    loss = jnp.maximum(x, 0.0) - x * z + jnp.log1p(jnp.exp(-jnp.abs(x)))

    tile_sum = jnp.sum(jnp.where(valid, loss, 0.0))
    tile_cnt = jnp.sum(valid.astype(jnp.float32))

    lane = jax.lax.broadcasted_iota(jnp.int32, acc_ref.shape, 2)   # (1, 1, 2)
    acc_ref[...] = acc_ref[...] + jnp.where(lane == 0, tile_sum, tile_cnt)


def masked_cross_entropy_loss(logits, target, *, binary=False, ignore_index=-100,
                              max_token_tile=8192, max_lane_rows=4096):
    """JAX/Pallas equivalent of MaskedCrossEntropyLoss.forward (masked-mean loss)."""
    num_partials, vmem_limit = _tpu_config()
    budget = (vmem_limit * 3) // 4            # VMEM budget for the per-tile working set

    if binary:
        # torch: input.squeeze(-1); BCE-with-logits, masked mean.
        x = jnp.squeeze(logits, axis=-1).reshape(-1)               # (N,), native dtype
        use_i8 = -128 <= ignore_index <= 127
        tgt_dtype = jnp.int8 if use_i8 else jnp.int32
        t = target.reshape(-1).astype(tgt_dtype)                   # int8: ~37% less HBM

        n = x.shape[0]
        itemsize = jnp.dtype(x.dtype).itemsize
        t_itemsize = jnp.dtype(tgt_dtype).itemsize
        align = max(_sublane_align(x.dtype), _sublane_align(tgt_dtype))

        rows_total = pl.cdiv(n, _LANES)
        # per-row working set: 2x logits + 2x targets (double-buffered) + ~3 f32 temps
        per_row = _LANES * (2 * itemsize + 2 * t_itemsize + 3 * 4)
        fit = max(1, budget // per_row)
        per_slice = _round_up(max(1, pl.cdiv(rows_total, num_partials)), align)
        tile_rows = max(align, (min(fit, max_lane_rows, per_slice) // align) * align)

        n_tiles = pl.cdiv(rows_total, num_partials * tile_rows)
        rows_pad = num_partials * n_tiles * tile_rows
        pad = rows_pad * _LANES - n
        if pad:
            x = jnp.pad(x, (0, pad))
            t = jnp.pad(t, (0, pad), constant_values=ignore_index)
        x2 = x.reshape(rows_pad, _LANES)
        t2 = t.reshape(rows_pad, _LANES)

        kernel = functools.partial(_masked_bce_kernel, ignore_index=ignore_index)
        x_block = (tile_rows, _LANES)
        t_block = (tile_rows, _LANES)
    else:
        # torch's permute(0, 2, 1) only adapts to F.cross_entropy's NCL layout;
        # semantically classes stay on the last (lane) dim here.
        b, s, c = logits.shape
        n = b * s
        x2 = logits.reshape(n, c)                                  # native dtype
        t2 = target.astype(jnp.int32).reshape(n, 1)

        itemsize = jnp.dtype(x2.dtype).itemsize
        align = _sublane_align(x2.dtype)
        cp = _round_up(c, _LANES)                                  # lane-padded C in VMEM
        # per-token working set: 2x native logits (double-buffered, lane-padded)
        # + ~3 full f32 temps (upcast / exp / select) + a few lane-padded (tn,1) columns.
        per_token = cp * (2 * itemsize + 3 * 4) + 6 * _LANES * 4
        fit = max(1, budget // per_token)
        per_slice = _round_up(max(1, pl.cdiv(n, num_partials)), align)
        token_tile = max(align, (min(fit, max_token_tile, per_slice) // align) * align)

        n_tiles = pl.cdiv(n, num_partials * token_tile)
        n_pad = num_partials * n_tiles * token_tile
        pad = n_pad - n
        if pad:
            x2 = jnp.pad(x2, ((0, pad), (0, 0)))
            t2 = jnp.pad(t2, ((0, pad), (0, 0)), constant_values=ignore_index)

        kernel = functools.partial(_masked_ce_kernel, ignore_index=ignore_index)
        x_block = (token_tile, c)
        t_block = (token_tile, 1)

    in_map = lambda p, i: (p * n_tiles + i, 0)
    out_map = lambda p, i: (p, 0, 0)

    acc = pl.pallas_call(
        kernel,
        out_shape=jax.ShapeDtypeStruct((num_partials, 1, 2), jnp.float32),
        grid_spec=pltpu.PrefetchScalarGridSpec(
            num_scalar_prefetch=0,
            grid=(num_partials, n_tiles),
            in_specs=[pl.BlockSpec(x_block, in_map),
                      pl.BlockSpec(t_block, in_map)],
            out_specs=pl.BlockSpec((1, 1, 2), out_map)),
        compiler_params=pltpu.CompilerParams(
            dimension_semantics=("parallel", "arbitrary"),
            vmem_limit_bytes=vmem_limit),
    )(x2, t2)

    # tiny final reduce + divide (NaN if every token is ignore_index — matches torch)
    return jnp.sum(acc[:, 0, 0]) / jnp.sum(acc[:, 0, 1])


def _reference(logits, target, *, binary, ignore_index):
    """Pure-JAX reference matching the torch module."""
    target = target.astype(jnp.int32)
    if binary:
        x = jnp.squeeze(logits, axis=-1).astype(jnp.float32)
        z = target.astype(jnp.float32)
        loss = jnp.maximum(x, 0.0) - x * z + jnp.log1p(jnp.exp(-jnp.abs(x)))
    else:
        logp = jax.nn.log_softmax(logits.astype(jnp.float32), axis=-1)
        safe_t = jnp.clip(target, 0, logits.shape[-1] - 1)
        loss = -jnp.take_along_axis(logp, safe_t[..., None], axis=-1)[..., 0]
    mask = target != ignore_index
    return jnp.sum(jnp.where(mask, loss, 0.0)) / jnp.sum(mask)


if __name__ == "__main__":
    key = jax.random.PRNGKey(0)
    keys = jax.random.split(key, 12)
    IGNORE = -100

    # --- non-binary path: logits (2, 8, 32), int targets (2, 8) ---
    B, S, C = 2, 8, 32
    logits = jax.random.normal(keys[0], (B, S, C), dtype=jnp.float32)
    target = jax.random.randint(keys[1], (B, S), 0, C, dtype=jnp.int32)
    target = jnp.where(jax.random.uniform(keys[2], (B, S)) < 0.25, IGNORE, target)
    out = jax.block_until_ready(
        masked_cross_entropy_loss(logits, target, binary=False, ignore_index=IGNORE))
    ref = _reference(logits, target, binary=False, ignore_index=IGNORE)
    assert jnp.allclose(out, ref, rtol=1e-4, atol=1e-5), (out, ref)

    # --- non-binary, bf16 inputs, odd sizes, forced multi-tile grid (padding + accumulation) ---
    B2, S2, C2 = 3, 37, 48
    logits2 = jax.random.normal(keys[3], (B2, S2, C2), dtype=jnp.bfloat16)
    target2 = jax.random.randint(keys[4], (B2, S2), 0, C2, dtype=jnp.int32)
    target2 = jnp.where(jax.random.uniform(keys[5], (B2, S2)) < 0.25, IGNORE, target2)
    out2 = jax.block_until_ready(
        masked_cross_entropy_loss(logits2, target2, binary=False, ignore_index=IGNORE,
                                  max_token_tile=32))
    ref2 = _reference(logits2, target2, binary=False, ignore_index=IGNORE)
    assert jnp.allclose(out2, ref2, rtol=1e-4, atol=1e-4), (out2, ref2)

    # --- binary path: logits (2, 8, 1), 0/1 targets (2, 8) with ignore marks ---
    logits_b = jax.random.normal(keys[6], (B, S, 1), dtype=jnp.float32)
    target_b = jax.random.randint(keys[7], (B, S), 0, 2, dtype=jnp.int32)
    target_b = jnp.where(jax.random.uniform(keys[8], (B, S)) < 0.25, IGNORE, target_b)
    out_b = jax.block_until_ready(
        masked_cross_entropy_loss(logits_b, target_b, binary=True, ignore_index=IGNORE))
    ref_b = _reference(logits_b, target_b, binary=True, ignore_index=IGNORE)
    assert jnp.allclose(out_b, ref_b, rtol=1e-4, atol=1e-5), (out_b, ref_b)

    # --- binary path, forced multi-tile lane-dense grid (int8 targets, accumulation) ---
    Bc, Sc = 2, 9000
    logits_c = jax.random.normal(keys[9], (Bc, Sc, 1), dtype=jnp.float32)
    target_c = jax.random.randint(keys[10], (Bc, Sc), 0, 2, dtype=jnp.int32)
    target_c = jnp.where(jax.random.uniform(keys[11], (Bc, Sc)) < 0.25, IGNORE, target_c)
    out_c = jax.block_until_ready(
        masked_cross_entropy_loss(logits_c, target_c, binary=True, ignore_index=IGNORE,
                                  max_lane_rows=64))
    ref_c = _reference(logits_c, target_c, binary=True, ignore_index=IGNORE)
    assert jnp.allclose(out_c, ref_c, rtol=1e-4, atol=1e-4), (out_c, ref_c)

    print("KERNEL_OK")
</pallas_src>

<mosaic_0001>
module attributes {stable_mosaic.version = 11 : i64} {
  func.func @_masked_ce_kernel(%arg0: i32, %arg1: i32, %arg2: memref<8x32xf32, #tpu.memory_space<vmem>>, %arg3: memref<8x1xi32, #tpu.memory_space<vmem>>, %arg4: memref<1x1x2xf32, #tpu.memory_space<vmem>>) attributes {dimension_semantics = [#tpu.dimension_semantics<parallel>, #tpu.dimension_semantics<arbitrary>], iteration_bounds = array<i64: 2, 1>, scalar_prefetch = 0 : i64, scratch_operands = 0 : i64, tpu.core_type = #tpu.core_type<tc>, window_params = [{transform_indices = @transform_0, window_bounds = array<i64: 8, 32>}, {transform_indices = @transform_1, window_bounds = array<i64: 8, 1>}, {transform_indices = @transform_2, window_bounds = array<i64: 1, 1, 2>}]} {
    %c0_i32 = arith.constant 0 : i32
    %0 = arith.cmpi eq, %arg1, %c0_i32 : i32
    %1 = arith.extui %0 : i1 to i32
    %c0_i32_0 = arith.constant 0 : i32
    %2 = arith.cmpi ne, %1, %c0_i32_0 : i32
    scf.if %2 {
      %cst_17 = arith.constant 0.000000e+00 : f32
      %44 = vector.broadcast %cst_17 : f32 to vector<1x1x2xf32>
      %c0_18 = arith.constant 0 : index
      %c0_19 = arith.constant 0 : index
      %c0_20 = arith.constant 0 : index
      %45 = vector.load %arg4[%c0_18, %c0_19, %c0_20] : memref<1x1x2xf32, #tpu.memory_space<vmem>>, vector<1x1x2xf32>
      tpu.vector_store %arg4[%c0_18, %c0_19, %c0_20], %44 {strides = array<i32>} : memref<1x1x2xf32, #tpu.memory_space<vmem>>, vector<1x1x2xf32>,
    } else {
    }
    %c0 = arith.constant 0 : index
    %c0_1 = arith.constant 0 : index
    %3 = vector.load %arg2[%c0, %c0_1] : memref<8x32xf32, #tpu.memory_space<vmem>>, vector<8x32xf32>
    %c0_2 = arith.constant 0 : index
    %c0_3 = arith.constant 0 : index
    %4 = vector.load %arg3[%c0_2, %c0_3] : memref<8x1xi32, #tpu.memory_space<vmem>>, vector<8x1xi32>
    %c-100_i32 = arith.constant -100 : i32
    %5 = vector.broadcast %c-100_i32 : i32 to vector<8x1xi32>
    %6 = arith.cmpi ne, %4, %5 : vector<8x1xi32>
    %cst = arith.constant dense<0xFF800000> : vector<8xf32>
    %7 = vector.multi_reduction <maximumf>, %3, %cst [1] : vector<8x32xf32> to vector<8xf32>
    %8 = vector.shape_cast %7 : vector<8xf32> to vector<8x1xf32>
    %9 = vector.broadcast %8 : vector<8x1xf32> to vector<8x32xf32>
    %10 = arith.subf %3, %9 : vector<8x32xf32>
    %11 = math.exp %10 : vector<8x32xf32>
    %cst_4 = arith.constant dense<0.000000e+00> : vector<8xf32>
    %12 = vector.multi_reduction <add>, %11, %cst_4 [1] : vector<8x32xf32> to vector<8xf32>
    %13 = vector.shape_cast %12 : vector<8xf32> to vector<8x1xf32>
    %14 = math.log %13 : vector<8x1xf32>
    %15 = tpu.iota {dimensions = array<i32: 1>} : vector<8x32xi32>
    %16 = vector.broadcast %4 : vector<8x1xi32> to vector<8x32xi32>
    %17 = arith.cmpi eq, %15, %16 : vector<8x32xi32>
    %cst_5 = arith.constant 0.000000e+00 : f32
    %18 = vector.broadcast %cst_5 : f32 to vector<8x32xf32>
    %19 = arith.select %17, %10, %18 : vector<8x32xi1>, vector<8x32xf32>
    %cst_6 = arith.constant dense<0.000000e+00> : vector<8xf32>
    %20 = vector.multi_reduction <add>, %19, %cst_6 [1] : vector<8x32xf32> to vector<8xf32>
    %21 = vector.shape_cast %20 : vector<8xf32> to vector<8x1xf32>
    %22 = arith.subf %14, %21 : vector<8x1xf32>
    %cst_7 = arith.constant 0.000000e+00 : f32
    %23 = vector.broadcast %cst_7 : f32 to vector<8x1xf32>
    %24 = arith.select %6, %22, %23 : vector<8x1xi1>, vector<8x1xf32>
    %25 = vector.shape_cast %24 : vector<8x1xf32> to vector<1x8x1xf32>
    %cst_8 = arith.constant dense<0.000000e+00> : vector<1xf32>
    %26 = vector.multi_reduction <add>, %25, %cst_8 [1, 2] : vector<1x8x1xf32> to vector<1xf32>
    %27 = vector.shape_cast %26 : vector<1xf32> to vector<1x1x1xf32>
    %28 = vector.extract %27[0, 0, 0] : f32 from vector<1x1x1xf32>
    %29 = arith.extui %6 : vector<8x1xi1> to vector<8x1xi32>
    %30 = arith.sitofp %29 : vector<8x1xi32> to vector<8x1xf32>
    %31 = vector.shape_cast %30 : vector<8x1xf32> to vector<1x8x1xf32>
    %cst_9 = arith.constant dense<0.000000e+00> : vector<1xf32>
    %32 = vector.multi_reduction <add>, %31, %cst_9 [1, 2] : vector<1x8x1xf32> to vector<1xf32>
    %33 = vector.shape_cast %32 : vector<1xf32> to vector<1x1x1xf32>
    %34 = vector.extract %33[0, 0, 0] : f32 from vector<1x1x1xf32>
    %35 = tpu.iota {dimensions = array<i32: 2>} : vector<1x1x2xi32>
    %c0_10 = arith.constant 0 : index
    %c0_11 = arith.constant 0 : index
    %c0_12 = arith.constant 0 : index
    %36 = vector.load %arg4[%c0_10, %c0_11, %c0_12] : memref<1x1x2xf32, #tpu.memory_space<vmem>>, vector<1x1x2xf32>
    %c0_i32_13 = arith.constant 0 : i32
    %37 = vector.broadcast %c0_i32_13 : i32 to vector<1x1x2xi32>
    %38 = arith.cmpi eq, %35, %37 : vector<1x1x2xi32>
    %39 = vector.broadcast %28 : f32 to vector<1x1x2xf32>
    %40 = vector.broadcast %34 : f32 to vector<1x1x2xf32>
    %41 = arith.select %38, %39, %40 : vector<1x1x2xi1>, vector<1x1x2xf32>
    %42 = arith.addf %36, %41 : vector<1x1x2xf32>
    %c0_14 = arith.constant 0 : index
    %c0_15 = arith.constant 0 : index
    %c0_16 = arith.constant 0 : index
    %43 = vector.load %arg4[%c0_14, %c0_15, %c0_16] : memref<1x1x2xf32, #tpu.memory_space<vmem>>, vector<1x1x2xf32>
    tpu.vector_store %arg4[%c0_14, %c0_15, %c0_16], %42 {strides = array<i32>} : memref<1x1x2xf32, #tpu.memory_space<vmem>>, vector<1x1x2xf32>,
    return
  }
  func.func @transform_0(%arg0: i32, %arg1: i32) -> (i32, i32) {
    %c1_i32 = arith.constant 1 : i32
    %0 = arith.muli %arg0, %c1_i32 : i32
    %1 = arith.addi %0, %arg1 : i32
    %c0_i32 = arith.constant 0 : i32
    %c0_i32_0 = arith.constant 0 : i32
    return %1, %c0_i32 : i32, i32
  }
  func.func @transform_1(%arg0: i32, %arg1: i32) -> (i32, i32) {
    %c1_i32 = arith.constant 1 : i32
    %0 = arith.muli %arg0, %c1_i32 : i32
    %1 = arith.addi %0, %arg1 : i32
    %c0_i32 = arith.constant 0 : i32
    %c0_i32_0 = arith.constant 0 : i32
    return %1, %c0_i32 : i32, i32
  }
  func.func @transform_2(%arg0: i32, %arg1: i32) -> (i32, i32, i32) {
    %c0_i32 = arith.constant 0 : i32
    %c0_i32_0 = arith.constant 0 : i32
    %c0_i32_1 = arith.constant 0 : i32
    return %arg0, %c0_i32, %c0_i32_0 : i32, i32, i32
  }
}

</mosaic_0001>

<llo_original>
// kernel: tpu_custom_call.1
$region0: #{tpu_custom_call.1}
  #allocation0 [shape = 'u32[]', space=smem, size = 0x4, offset = 0x4, fixed_abs, tag = 'smem constant byte address 0x4 - core index']
  #allocation1 [shape = 'u32[144,128]{1,0:T(1,128)}', space=vmem, size = 0x12000, scoped, tag = 'internal scratch']
  %s0 = inlined_call_operand.vmem [shape: f32[16,32], index: 0, kind: input, shape index: {}]
  %s1 = inlined_call_operand.vmem [shape: s32[16,1], index: 1, kind: input, shape index: {}]
  %s2 = inlined_call_operand.hbm [shape: f32[2,1,2], index: 2, kind: output, shape index: {}]
  %s3 = sld [smem:[#allocation0]]
  $region45: #{tpu_custom_call.1} parent=0
    _
  %s5 = ssub.s32 1, %s3
  %s6 = scalar_select 0, %s5, %s3
  $region1: #{tpu_custom_call.1} parent=0
    #allocation2 [shape = 'u8[1024]{0}', space=vmem, size = 0x400, scoped, tag = 'output window, operand 0']
    #allocation3 [shape = 's32[2]{0}', space=sflag, size = 0x8, scoped, tag = 'scoped memory for tpu_custom_call.1']
    %7 = vsyncpa [#allocation3], 0
    %s8 = scalar_lea.sflag [#allocation3], 1
    %9 = vsyncpa %s8, 0
    loop: start=0, step=1, limit=4
    $region2: #{tpu_custom_call.1} parent=1 // loop_pre_header
      _
    $region3: #{tpu_custom_call.1} parent=1 // loop_header
      %s11 = sphi 0, %s15
      %p12 = scmp.ge.s32.totalorder %s11, 4
      %s18 = sphi 0, %s30
      %s19 = sphi 0, %s26
      %s20 = sphi 0, %s18
      %s21 = sphi 0, %s19
      %s22 = sphi 0, %s20
      %s23 = sphi 0, %s21
      %s35 = sphi 0, %s37
      %s38 = sphi 0, %s35
      %s39 = sphi 0, %s38
      %s55 = sphi 0, %s39
      %s63 = sphi 0, %s65
      %s66 = sphi 0, %s63
      %s67 = sphi 0, %s66
      %s83 = sphi 0, %s67
      %s89 = sphi 0, %s91
      %s92 = sphi 0, %s89
      %s93 = sphi 0, %s92
      %s109 = sphi 0, %s93
    $region4: #{tpu_custom_call.1} parent=1 // loop_header_branch
      %14 = sbr.rel (%p12) target = $region8
    $region5: #{tpu_custom_call.1} parent=1 // loop_body
      %s16 = ssub.s32 %s11, 1
      %s17 = ssub.s32 %s11, 2
      %s24 = sadd.s32 1, %s19
      %p25 = scmp.ge.s32.totalorder %s24, 1
      %s26 = scalar_select %p25, 0, %s24
      %s27 = sadd.s32 1, %s18
      %s28 = scalar_select %p25, %s27, %s18
      %p29 = scmp.ge.s32.totalorder %s28, 2
      %s30 = scalar_select %p29, 0, %s28
      %s31 = sadd.s32 %s18, %s19
      %s32 = sadd.s32 %s30, %s26
      %s33 = ssub.s32 %s31, %s32
      %p34 = scmp.eq.s32.totalorder %s33, 0
      %s36 = sadd.s32 %s35, 1
      %s37 = scalar_select %p34, %s35, %s36
      %p40 = pneg %p34
      %p41 = scmp.eq.s32.totalorder %s11, 1
      %p42 = por %p40, %p41
      %p43 = scmp.ne.s32.totalorder %s35, %s38
      %p44 = scmp.eq.s32.totalorder %s11, 0
      %p45 = por %p43, %p44
      %p46 = scmp.ne.s32.totalorder %s35, %s38
      %p47 = scmp.eq.s32.totalorder %s16, 1
      %p48 = por %p46, %p47
      %p49 = scmp.ne.s32.totalorder %s38, %s39
      %p50 = scmp.eq.s32.totalorder %s16, 0
      %p51 = por %p49, %p50
      %p52 = scmp.ne.s32.totalorder %s38, %s39
      %p53 = scmp.eq.s32.totalorder %s17, 1
      %p54 = por %p52, %p53
      %p56 = scmp.ne.s32.totalorder %s39, %s55
      %p57 = scmp.eq.s32.totalorder %s17, 0
      %p58 = por %p56, %p57
      %s59 = sadd.s32 %s18, %s19
      %s60 = sadd.s32 %s30, %s26
      %s61 = ssub.s32 %s59, %s60
      %p62 = scmp.eq.s32.totalorder %s61, 0
      %s64 = sadd.s32 %s63, 1
      %s65 = scalar_select %p62, %s63, %s64
      %p68 = pneg %p62
      %p69 = scmp.eq.s32.totalorder %s11, 1
      %p70 = por %p68, %p69
      %p71 = scmp.ne.s32.totalorder %s63, %s66
      %p72 = scmp.eq.s32.totalorder %s11, 0
      %p73 = por %p71, %p72
      %p74 = scmp.ne.s32.totalorder %s63, %s66
      %p75 = scmp.eq.s32.totalorder %s16, 1
      %p76 = por %p74, %p75
      %p77 = scmp.ne.s32.totalorder %s66, %s67
      %p78 = scmp.eq.s32.totalorder %s16, 0
      %p79 = por %p77, %p78
      %p80 = scmp.ne.s32.totalorder %s66, %s67
      %p81 = scmp.eq.s32.totalorder %s17, 1
      %p82 = por %p80, %p81
      %p84 = scmp.ne.s32.totalorder %s67, %s83
      %p85 = scmp.eq.s32.totalorder %s17, 0
      %p86 = por %p84, %p85
      %s87 = ssub.s32 %s18, %s30
      %p88 = scmp.eq.s32.totalorder %s87, 0
      %s90 = sadd.s32 %s89, 1
      %s91 = scalar_select %p88, %s89, %s90
      %p94 = pneg %p88
      %p95 = scmp.eq.s32.totalorder %s11, 1
      %p96 = por %p94, %p95
      %p97 = scmp.ne.s32.totalorder %s89, %s92
      %p98 = scmp.eq.s32.totalorder %s11, 0
      %p99 = por %p97, %p98
      %p100 = scmp.ne.s32.totalorder %s89, %s92
      %p101 = scmp.eq.s32.totalorder %s16, 1
      %p102 = por %p100, %p101
      %p103 = scmp.ne.s32.totalorder %s92, %s93
      %p104 = scmp.eq.s32.totalorder %s16, 0
      %p105 = por %p103, %p104
      %p106 = scmp.ne.s32.totalorder %s92, %s93
      %p107 = scmp.eq.s32.totalorder %s17, 1
      %p108 = por %p106, %p107
      %p110 = scmp.ne.s32.totalorder %s93, %s109
      %p111 = scmp.eq.s32.totalorder %s17, 0
      %p112 = por %p110, %p111
      %p113 = scmp.le.s32.totalorder 1, %s11
      %p114 = scmp.lt.s32.totalorder %s11, 3
      %p115 = pnand %p113, %p114
      %p116 = pneg %p115
      // Predicated region
      $region9: #{tpu_custom_call.1} parent=5 // pred_check
        _
      $region10: #{tpu_custom_call.1} parent=5 // pred_check_branch
        %118 = sbr.rel (%p115) target = $region12
      $region11: #{tpu_custom_call.1} parent=5 // pred_region
        %s119 = ssub.s32 %s11, 1
      $region12: #{tpu_custom_call.1} parent=5 // pred_fallthru
        _
      %p120 = scmp.lt.s32.totalorder %s11, 2
      // Predicated region
      $region13: #{tpu_custom_call.1} parent=5 // pred_check
        %p121 = pneg %p120
      $region14: #{tpu_custom_call.1} parent=5 // pred_check_branch
        %123 = sbr.rel (%p121) target = $region16
      $region15: #{tpu_custom_call.1} parent=5 // pred_region
        // Predicated region
        $region17: #{tpu_custom_call.1} parent=15 // pred_check
          %p124 = pneg %p45
        $region18: #{tpu_custom_call.1} parent=15 // pred_check_branch
          %126 = sbr.rel (%p124) target = $region20
        $region19: #{tpu_custom_call.1} parent=15 // pred_region
          %s127 = sadd.s32 %s18, %s19
          %p128 = scmp.lt.s32.totalorder %s127, 1
          %s129 = scalar_select %p128, %s127, 1
          %s130 = smul.addr %s129, 8
          %s131 = scalar_lea.vmem %s0, %s130
          %s132 = sadd.s32 %s18, %s19
        $region20: #{tpu_custom_call.1} parent=15 // pred_fallthru
          _
        // Predicated region
        $region21: #{tpu_custom_call.1} parent=15 // pred_check
          %p133 = pneg %p73
        $region22: #{tpu_custom_call.1} parent=15 // pred_check_branch
          %135 = sbr.rel (%p133) target = $region24
        $region23: #{tpu_custom_call.1} parent=15 // pred_region
          %s136 = sadd.s32 %s18, %s19
          %p137 = scmp.lt.s32.totalorder %s136, 1
          %s138 = scalar_select %p137, %s136, 1
          %s139 = smul.addr %s138, 8
          %s140 = scalar_lea.vmem %s1, %s139
          %s141 = sadd.s32 %s18, %s19
        $region24: #{tpu_custom_call.1} parent=15 // pred_fallthru
          _
      $region16: #{tpu_custom_call.1} parent=5 // pred_fallthru
        _
      %p142 = scmp.le.s32.totalorder 1, %s11
      %p143 = scmp.lt.s32.totalorder %s11, 3
      %p144 = pnand %p142, %p143
      %p145 = pneg %p144
      // Predicated region
      $region25: #{tpu_custom_call.1} parent=5 // pred_check
        _
      $region26: #{tpu_custom_call.1} parent=5 // pred_check_branch
        %147 = sbr.rel (%p144) target = $region28
      $region27: #{tpu_custom_call.1} parent=5 // pred_region
        %s148 = ssub.s32 %s11, 1
        %s149 = sadd.s32 %s20, %s21
        %p150 = scmp.lt.s32.totalorder %s149, 1
        %s151 = scalar_select %p150, %s149, 1
        %s152 = smul.addr %s151, 8
        %s153 = scalar_lea.vmem %s0, %s152
        %p154 = pneg %p51
        %p155 = pneg %p48
        %s156 = sadd.s32 %s20, %s21
        %p157 = scmp.lt.s32.totalorder %s156, 1
        %s158 = scalar_select %p157, %s156, 1
        %s159 = smul.addr %s158, 8
        %s160 = scalar_lea.vmem %s1, %s159
        %p161 = pneg %p79
        %p162 = pneg %p76
        %p163 = pneg %p105
        %p164 = pneg %p102
        %s165 = sand.u32 %s92, 1
        %s166 = scalar_lea.sflag [#allocation3], %s165
        %s167 = sand.u32 %s92, 1
        %s168 = scalar_lea.vmem [#allocation2], %s167
        %s169 = sadd.s32 %s20, %s21
        %p170 = scmp.lt.s32.totalorder %s169, 1
        %s171 = scalar_select %p170, %s169, 1
        %s172 = smul.addr %s171, 8
        %s173 = scalar_lea.vmem %s0, %s172
        %s174 = sadd.s32 %s20, %s21
        %s175 = sadd.s32 %s20, %s21
        %p176 = scmp.lt.s32.totalorder %s175, 1
        %s177 = scalar_select %p176, %s175, 1
        %s178 = smul.addr %s177, 8
        %s179 = scalar_lea.vmem %s1, %s178
        %s180 = sadd.s32 %s20, %s21
        %p181 = scmp.eq.s32.totalorder %s21, 0
        // Predicated region
        $region29: #{tpu_custom_call.1} parent=27 // pred_check
          %p182 = pneg %p181
        $region30: #{tpu_custom_call.1} parent=27 // pred_check_branch
          %184 = sbr.rel (%p182) target = $region32
        $region31: #{tpu_custom_call.1} parent=27 // pred_region
          %vm185 = vcmask 8192
          %186 = vst.msk [vmem:[%s168] sm:$0x1] %vm185, 0.0
        $region32: #{tpu_custom_call.1} parent=27 // pred_fallthru
          _
        %v187 = vld [vmem:[%s173] sm:$0xff]
        %v188 = vld [vmem:[%s179] sm:$0xff]
        %vm189 = vcmp.ne.s32.totalorder %v188, 4294967196
        %vm190 = vcmask 261120
        %v191 = vsel %vm190, %v187, -inf
        %192 = vmax.xlane.f32.xlu0 %v191
        %v193 = vpop.xlane.xlu0 %192
        %v194 = vsub.f32 %v187, %v193
        %v195 = vmul.f32 %v194, 1.442695
        %v196 = vpow.pop %v195
        %v197 = vsel %vm190, %v196, 0.0
        %198 = vadd.xlane.f32.xlu0 %v197
        %v199 = vpop.xlane.xlu0 %198
        %v200 = vlog2.pop %v199
        %v201 = vmul.f32 %v200, 0.6931472
        %v202 = vlaneseq
        %v203 = vand.u32 %v202, 127
        %204 = vset.pattern.permute.xlu0 0
        %205 = vperm.xlu0 %204, %v188
        %v206 = vpop.permute.xlu0 %205
        %vm207 = vcmp.eq.s32.totalorder %v203, %v206
        %v208 = vsel %vm207, %v194, 0.0
        %v209 = vsel %vm190, %v208, 0.0
        %210 = vadd.xlane.f32.xlu0 %v209
        %v211 = vpop.xlane.xlu0 %210
        %v212 = vsub.f32 %v201, %v211
        %v213 = vsel %vm189, %v212, 0.0
        %vm214 = vcmask 7168
        %v215 = vsel %vm214, %v213, 0.0
        %216 = vadd.xlane.f32.xlu0 %v215
        %v217 = vpop.xlane.xlu0 %216
        %v218 = vrot.slane %v217, 4
        %v219 = vadd.f32 %v217, %v218
        %v220 = vrot.slane %v219, 2
        %v221 = vadd.f32 %v219, %v220
        %v222 = vrot.slane %v221, 1
        %v223 = vadd.f32 %v221, %v222
        %s224 = vtos %v223
        %v225 = vsel %vm189, 1, 0
        %v226 = vcvt.s32.f32 %v225
        %v227 = vsel %vm214, %v226, 0.0
        %228 = vadd.xlane.f32.xlu0 %v227
        %v229 = vpop.xlane.xlu0 %228
        %v230 = vrot.slane %v229, 4
        %v231 = vadd.f32 %v229, %v230
        %v232 = vrot.slane %v231, 2
        %v233 = vadd.f32 %v231, %v232
        %v234 = vrot.slane %v233, 1
        %v235 = vadd.f32 %v233, %v234
        %s236 = vtos %v235
        %v237 = vld [vmem:[%s168] sm:$0x1]
        %vm238 = vcmp.eq.s32.totalorder %v203, 0
        %v239 = vstv %s224
        %v240 = vstv %s236
        %v241 = vsel %vm238, %v239, %v240
        %v242 = vadd.f32 %v237, %v241
        %vm243 = vcmask 8192
        %244 = vst.msk [vmem:[%s168] sm:$0x1] %vm243, %v242
        %s245 = sand.u32 %s92, 1
        %s246 = scalar_lea.sflag [#allocation3], %s245
        %s247 = sand.u32 %s92, 1
        %s248 = scalar_lea.vmem [#allocation2], %s247
        // Predicated region
        $region33: #{tpu_custom_call.1} parent=27 // pred_check
          %p249 = pneg %p102
        $region34: #{tpu_custom_call.1} parent=27 // pred_check_branch
          %251 = sbr.rel (%p249) target = $region36
        $region35: #{tpu_custom_call.1} parent=27 // pred_region
          %s253 = ssub.s32 16, 16
          %254 = vsyncadd %s246, %s253
          %s255 = smul.addr %s20, 16
          %s256 = scalar_lea.hbm %s2, %s255
          %s258 = sshll.u32 %s248, 4
          %s259 = int_to_ptr.vmem [resolvable:$true] %s258
          %261 = dma.vmem_to_hbm [thread:$0]  %s259, 16, %s256, %s246
        $region36: #{tpu_custom_call.1} parent=27 // pred_fallthru
          _
      $region28: #{tpu_custom_call.1} parent=5 // pred_fallthru
        _
      %p262 = scmp.le.s32.totalorder 2, %s11
      // Predicated region
      $region37: #{tpu_custom_call.1} parent=5 // pred_check
        %p263 = pneg %p262
      $region38: #{tpu_custom_call.1} parent=5 // pred_check_branch
        %265 = sbr.rel (%p263) target = $region40
      $region39: #{tpu_custom_call.1} parent=5 // pred_region
        %s266 = ssub.s32 %s11, 2
        // Predicated region
        $region41: #{tpu_custom_call.1} parent=39 // pred_check
          %p267 = pneg %p108
        $region42: #{tpu_custom_call.1} parent=39 // pred_check_branch
          %269 = sbr.rel (%p267) target = $region44
        $region43: #{tpu_custom_call.1} parent=39 // pred_region
          %s270 = sand.u32 %s93, 1
          %s271 = scalar_lea.sflag [#allocation3], %s270
          %s272 = sand.u32 %s93, 1
          %s273 = scalar_lea.vmem [#allocation2], %s272
          %274 = dma.done %s271, 16
        $region44: #{tpu_custom_call.1} parent=39 // pred_fallthru
          _
      $region40: #{tpu_custom_call.1} parent=5 // pred_fallthru
        _
    $region6: #{tpu_custom_call.1} parent=1 // loop_footer
      %s15 = sadd.s32 1, %s11
    $region7: #{tpu_custom_call.1} parent=1 // loop_footer_branch
      %10 = sbr.rel target = $region3
    $region8: #{tpu_custom_call.1} parent=1 // loop_exit
      _
    %275 = vsyncpa [#allocation3], 1
    %s276 = scalar_lea.sflag [#allocation3], 1
    %277 = vsyncpa %s276, 1

</llo_original>
